<compile_context>
chip_gen: v5e
topology: v5e:2x2
jax: 0.10.0
libtpu: 0.0.40
codegen_flags: <defaults>
</compile_context>

<pallas_src>
import functools
import math

import jax
import jax.numpy as jnp
from jax import lax
from jax.experimental import pallas as pl
from jax.experimental.pallas import tpu as pltpu


def _round_up(x: int, m: int) -> int:
    return (x + m - 1) // m * m


def _tpu_kind() -> str:
    try:
        return jax.devices()[0].device_kind.lower()
    except Exception:
        return ""


def _vmem_capacity_bytes() -> int:
    """Best-effort per-core VMEM capacity (v5e/v6e: 128 MiB, v7x: 64 MiB)."""
    try:
        cap = getattr(pltpu.get_tpu_info(), "vmem_capacity_bytes", None)
        if cap:
            return int(cap)
    except Exception:
        pass
    kind = _tpu_kind()
    if "v7" in kind or "tpu7" in kind:
        return 64 * 2**20
    if any(v in kind for v in ("v4", "v5", "v6")):
        return 128 * 2**20
    return 64 * 2**20  # unknown -> be conservative


# ---------------------------------------------------------------------------
# Path 1: small vocabulary -> VMEM-resident table, one-hot gather on the MXU.
# ---------------------------------------------------------------------------
def _embedding_onehot_kernel(ids_ref, emb_ref, out_ref, *, vocab, scale):
    """ids_ref: VMEM (T,1) int32; emb_ref: VMEM (vocab,d); out_ref: (T,d)."""
    tpb = out_ref.shape[0]
    ids = jnp.clip(ids_ref[...], 0, vocab - 1)                  # (T,1), OOB-safe
    col = lax.broadcasted_iota(jnp.int32, (tpb, vocab), 1)      # (T,V)
    onehot = ids == col                                         # bool (T,V)
    table = emb_ref[...]

    if table.dtype == jnp.float32:
        # Exact(-to-~1 ulp) f32 row-select in 3 MXU passes instead of
        # precision=HIGHEST's 6: split the table into bf16 hi/mid/lo planes
        # (hi+mid+lo reconstructs the f32 value; the splitting subtractions are
        # exact in f32).  The one-hot operand is exact in bf16 and each matmul
        # accumulates exactly one nonzero term per output, so each pass is an
        # exact plane gather; the f32 re-sum recovers full f32 accuracy.
        oh = onehot.astype(jnp.bfloat16)
        hi = table.astype(jnp.bfloat16)
        r1 = table - hi.astype(jnp.float32)
        mid = r1.astype(jnp.bfloat16)
        lo = (r1 - mid.astype(jnp.float32)).astype(jnp.bfloat16)
        g = jnp.dot(oh, hi, preferred_element_type=jnp.float32)
        g = g + jnp.dot(oh, mid, preferred_element_type=jnp.float32)
        g = g + jnp.dot(oh, lo, preferred_element_type=jnp.float32)
    else:
        # bf16/f16 tables: a single default-precision pass is already exact
        # (one nonzero product per output, f32 accumulation).
        oh = onehot.astype(table.dtype)
        g = jnp.dot(oh, table, preferred_element_type=jnp.float32)

    out_ref[...] = (g * scale).astype(out_ref.dtype)            # block-wide scale+store


# ---------------------------------------------------------------------------
# Path 2: large vocabulary -> table in HBM, pipelined per-row DMA gather that
# lands directly in out_ref (no intermediate VMEM scratch).
# ---------------------------------------------------------------------------
def _embedding_dma_gather_kernel(
    ids_ref,       # SMEM (chunk_tokens,) int32, scalar-prefetched token ids
    emb_hbm_ref,   # HBM  (vocab, d_model), memory_space=pl.ANY
    out_ref,       # VMEM (tokens_per_block, d_model) -- DMA destination
    copy_sems,     # DMA semaphores (depth,)
    *,
    tokens_per_block,
    scale,
    vocab,
    depth,
    unroll,
):
    base = pl.program_id(0) * tokens_per_block

    def tok_of(j):
        return jnp.clip(ids_ref[base + j], 0, vocab - 1)

    def row_copy(j, tok):
        return pltpu.make_async_copy(
            emb_hbm_ref.at[pl.ds(tok, 1), :],
            out_ref.at[pl.ds(j, 1), :],
            copy_sems.at[j & (depth - 1)],       # depth is a power of two
        )

    # Prime the pipe: `depth` row DMAs in flight.
    for j in range(depth):
        row_copy(j, tok_of(j)).start()

    def body(o, carry):
        j0 = o * unroll
        # Read every SMEM token id this unrolled block needs *before* any
        # .wait(): DMA waits break SMEM store->load forwarding.
        cur = [tok_of(j0 + u) for u in range(unroll)]
        nxt = [tok_of(jnp.minimum(j0 + u + depth, tokens_per_block - 1))
               for u in range(unroll)]
        for u in range(unroll):
            j = j0 + u
            # Wait on this row (descriptor rebuilt with the *real* source row).
            row_copy(j, cur[u]).wait()

            @pl.when(j + depth < tokens_per_block)
            def _(j_next=j + depth, tok_next=nxt[u]):
                row_copy(j_next, tok_next).start()

        return carry

    lax.fori_loop(0, tokens_per_block // unroll, body, 0)

    # All rows are now resident in out_ref: scale the block in place.
    out_ref[...] = out_ref[...] * jnp.asarray(scale, dtype=out_ref.dtype)


# ---------------------------------------------------------------------------
# Wrapper
# ---------------------------------------------------------------------------
def embeddings_forward(ids, emb_table, *, tokens_per_block=None,
                       gather_mode="auto", onehot_max_vocab=None):
    """JAX wrapper reproducing Embeddings.forward: embedding(x) * sqrt(d_model)."""
    batch_shape = ids.shape
    vocab, d_model = emb_table.shape
    dtype = emb_table.dtype
    scale = math.sqrt(float(d_model))
    itemsize = jnp.dtype(dtype).itemsize
    row_bytes = d_model * itemsize
    table_bytes = vocab * row_bytes

    kind = _tpu_kind()
    vmem_cap = _vmem_capacity_bytes()

    ids_flat = ids.reshape(-1).astype(jnp.int32)
    n_tokens = int(ids_flat.shape[0])

    # ---- choose gather strategy -----------------------------------------
    f32_split_bytes = 4 * table_bytes if dtype == jnp.float32 else 0
    if gather_mode == "auto":
        if onehot_max_vocab is None:
            # v5e crosses its MXU/HBM roofline much earlier -> smaller one-hot vocab.
            onehot_max_vocab = 512 if "v5" in kind else 1024
        if row_bytes < 1024:
            # Sub-KiB rows: per-row DMAs are pure HBM latency; prefer the MXU gather.
            onehot_max_vocab = max(onehot_max_vocab, 4096)
        need_est = (2 * table_bytes + 2 * 512 * row_bytes + 512 * vocab * 4
                    + f32_split_bytes + (4 << 20))
        use_onehot = (vocab <= onehot_max_vocab) and (need_est <= int(0.75 * vmem_cap))
    elif gather_mode == "onehot":
        use_onehot = True
    elif gather_mode == "dma":
        use_onehot = False
    else:
        raise ValueError(f"unknown gather_mode: {gather_mode!r}")

    # =======================================================================
    # Path 1: one-hot MXU gather (table VMEM-resident)
    # =======================================================================
    if use_onehot:
        tpb = _round_up(int(tokens_per_block) if tokens_per_block else 512, 8)
        if n_tokens < tpb:
            tpb = _round_up(n_tokens, 8)
        n_pad = _round_up(n_tokens, tpb)
        if n_pad != n_tokens:
            ids_flat = jnp.pad(ids_flat, (0, n_pad - n_tokens))  # pad with id 0 (clamped)
        grid = (n_pad // tpb,)
        out_block_bytes = tpb * row_bytes

        # The table's index_map is constant, so when it is large relative to
        # VMEM request a single buffer instead of the default double buffer.
        single_buffer_table = 2 * table_bytes > vmem_cap // 4
        if single_buffer_table:
            table_spec = pl.BlockSpec((vocab, d_model), lambda i: (0, 0),
                                      pipeline_mode=pl.Buffered(1))
        else:
            table_spec = pl.BlockSpec((vocab, d_model), lambda i: (0, 0))

        need = ((table_bytes if single_buffer_table else 2 * table_bytes)
                + 2 * out_block_bytes + tpb * vocab * 4
                + f32_split_bytes + (4 << 20))
        vmem_limit = int(min(max(32 << 20, need), vmem_cap - (8 << 20)))

        passes = 3 if dtype == jnp.float32 else 1
        cost = pl.CostEstimate(
            flops=2 * n_pad * vocab * d_model * passes,
            transcendentals=0,
            bytes_accessed=table_bytes + n_pad * row_bytes + n_pad * 4,
        )

        out_flat = pl.pallas_call(
            functools.partial(_embedding_onehot_kernel, vocab=vocab, scale=scale),
            out_shape=jax.ShapeDtypeStruct((n_pad, d_model), dtype),
            grid=grid,
            in_specs=[
                pl.BlockSpec((tpb, 1), lambda i: (i, 0)),   # token-id block
                table_spec,                                 # resident table
            ],
            out_specs=pl.BlockSpec((tpb, d_model), lambda i: (i, 0)),
            compiler_params=pltpu.CompilerParams(
                dimension_semantics=("parallel",),          # blocks independent
                vmem_limit_bytes=vmem_limit,
            ),
            cost_estimate=cost,
        )(ids_flat.reshape(n_pad, 1), emb_table)

        return out_flat[:n_tokens].reshape(*batch_shape, d_model)

    # =======================================================================
    # Path 2: HBM row gather, DMA'd straight into the output block
    # =======================================================================
    tpb = int(tokens_per_block) if tokens_per_block else (
        1024 if vmem_cap >= (96 << 20) else 512)
    tpb = _round_up(tpb, 8)
    # Shrink until the double-buffered output block (+ epilogue temp) fits VMEM.
    while tpb > 8 and 3 * tpb * row_bytes + (2 << 20) > vmem_cap // 2:
        tpb //= 2
    if n_tokens < tpb:
        tpb = _round_up(n_tokens, 8)
    n_pad = _round_up(n_tokens, tpb)
    if n_pad != n_tokens:
        ids_flat = jnp.pad(ids_flat, (0, n_pad - n_tokens))

    depth = 16 if tpb >= 16 else 8          # row DMAs in flight (power of two)
    unroll = 8                              # tpb is always a multiple of 8
    out_block_bytes = tpb * row_bytes
    vmem_limit = int(min(max(32 << 20, 3 * out_block_bytes + (2 << 20)),
                         vmem_cap - (8 << 20)))

    kernel = functools.partial(
        _embedding_dma_gather_kernel,
        tokens_per_block=tpb, scale=scale, vocab=vocab, depth=depth, unroll=unroll)

    # Chunk the token axis so the scalar-prefetched ids stay small in SMEM
    # (1-D SMEM arrays pad to next_pow2(4N) bytes).
    chunk = max(tpb, (8192 // tpb) * tpb)
    outs = []
    for start in range(0, n_pad, chunk):
        ids_c = ids_flat[start:start + chunk]
        n_c = int(ids_c.shape[0])
        cost = pl.CostEstimate(
            flops=n_c * d_model,
            transcendentals=0,
            bytes_accessed=2 * n_c * row_bytes + n_c * 4,
        )
        out_c = pl.pallas_call(
            kernel,
            out_shape=jax.ShapeDtypeStruct((n_c, d_model), dtype),
            grid_spec=pltpu.PrefetchScalarGridSpec(
                num_scalar_prefetch=1,                      # ids -> SMEM
                grid=(n_c // tpb,),
                in_specs=[pl.BlockSpec(memory_space=pl.ANY)],   # table stays in HBM
                out_specs=pl.BlockSpec((tpb, d_model), lambda i, ids: (i, 0)),
                scratch_shapes=[pltpu.SemaphoreType.DMA((depth,))],
            ),
            compiler_params=pltpu.CompilerParams(
                dimension_semantics=("parallel",),
                vmem_limit_bytes=vmem_limit,
            ),
            cost_estimate=cost,
        )(ids_c, emb_table)
        outs.append(out_c)

    out_flat = outs[0] if len(outs) == 1 else jnp.concatenate(outs, axis=0)
    return out_flat[:n_tokens].reshape(*batch_shape, d_model)


if __name__ == "__main__":
    # Shapes consistent with the module: model_dimensions=128, vocab=64,
    # x: (batch=2, seq=8) int token ids.
    model_dimensions = 128
    vocab = 64
    batch, seq = 2, 8

    key = jax.random.PRNGKey(0)
    k_ids, k_emb = jax.random.split(key)
    x = jax.random.randint(k_ids, (batch, seq), 0, vocab, dtype=jnp.int32)
    emb_weight = jax.random.normal(k_emb, (vocab, model_dimensions), jnp.float32)

    ref = jnp.take(emb_weight, x, axis=0) * math.sqrt(model_dimensions)

    # Path 1: small vocab -> VMEM-resident table, MXU one-hot gather.
    out = jax.block_until_ready(embeddings_forward(x, emb_weight))
    assert out.shape == (batch, seq, model_dimensions)
    assert out.dtype == emb_weight.dtype
    assert jnp.allclose(out, ref, rtol=1e-5, atol=1e-5)

    # Path 2: force the HBM row-DMA gather path (used for large vocabularies).
    out_dma = jax.block_until_ready(embeddings_forward(x, emb_weight, gather_mode="dma"))
    assert jnp.allclose(out_dma, ref, rtol=1e-6, atol=1e-6)

    # Path 3: auto heuristic on a slightly larger, non-power-of-two config.
    d2, v2, b2, s2 = 256, 1000, 2, 128
    k_ids2, k_emb2 = jax.random.split(k_emb)
    x2 = jax.random.randint(k_ids2, (b2, s2), 0, v2, dtype=jnp.int32)
    w2 = jax.random.normal(k_emb2, (v2, d2), jnp.float32)
    ref2 = jnp.take(w2, x2, axis=0) * math.sqrt(d2)
    out2 = jax.block_until_ready(embeddings_forward(x2, w2))
    assert jnp.allclose(out2, ref2, rtol=1e-5, atol=1e-5)

    print("KERNEL_OK")
</pallas_src>

<mosaic_0001>
module attributes {stable_mosaic.version = 11 : i64} {
  func.func @_embedding_onehot_kernel(%arg0: i32, %arg1: memref<16x1xi32, #tpu.memory_space<vmem>>, %arg2: memref<64x128xf32, #tpu.memory_space<vmem>>, %arg3: memref<16x128xf32, #tpu.memory_space<vmem>>) attributes {dimension_semantics = [#tpu.dimension_semantics<parallel>], iteration_bounds = array<i64: 1>, scalar_prefetch = 0 : i64, scratch_operands = 0 : i64, tpu.core_type = #tpu.core_type<tc>, window_params = [{transform_indices = @transform_0, window_bounds = array<i64: 16, 1>}, {pipeline_mode = #tpu.pipeline_mode<synchronous>, transform_indices = @transform_1, window_bounds = array<i64: 64, 128>}, {transform_indices = @transform_2, window_bounds = array<i64: 16, 128>}]} {
    %c0 = arith.constant 0 : index
    %c0_0 = arith.constant 0 : index
    %0 = vector.load %arg1[%c0, %c0_0] : memref<16x1xi32, #tpu.memory_space<vmem>>, vector<16x1xi32>
    %c0_i32 = arith.constant 0 : i32
    %c63_i32 = arith.constant 63 : i32
    %1 = vector.broadcast %c0_i32 : i32 to vector<16x1xi32>
    %2 = arith.maxsi %1, %0 : vector<16x1xi32>
    %3 = vector.broadcast %c63_i32 : i32 to vector<16x1xi32>
    %4 = arith.minsi %3, %2 : vector<16x1xi32>
    %5 = tpu.iota {dimensions = array<i32: 1>} : vector<16x64xi32>
    %6 = vector.broadcast %4 : vector<16x1xi32> to vector<16x64xi32>
    %7 = arith.cmpi eq, %6, %5 : vector<16x64xi32>
    %c0_1 = arith.constant 0 : index
    %c0_2 = arith.constant 0 : index
    %8 = vector.load %arg2[%c0_1, %c0_2] : memref<64x128xf32, #tpu.memory_space<vmem>>, vector<64x128xf32>
    %9 = arith.extui %7 : vector<16x64xi1> to vector<16x64xi32>
    %10 = arith.sitofp %9 : vector<16x64xi32> to vector<16x64xf32>
    %11 = arith.truncf %10 : vector<16x64xf32> to vector<16x64xbf16>
    %12 = arith.truncf %8 : vector<64x128xf32> to vector<64x128xbf16>
    %13 = arith.extf %12 : vector<64x128xbf16> to vector<64x128xf32>
    %14 = arith.subf %8, %13 : vector<64x128xf32>
    %15 = arith.truncf %14 : vector<64x128xf32> to vector<64x128xbf16>
    %16 = arith.extf %15 : vector<64x128xbf16> to vector<64x128xf32>
    %17 = arith.subf %14, %16 : vector<64x128xf32>
    %18 = arith.truncf %17 : vector<64x128xf32> to vector<64x128xbf16>
    %cst = arith.constant dense<0.000000e+00> : vector<16x128xf32>
    %19 = tpu.matmul %11, %12, %cst {dimension_numbers = #tpu.dot_dimension_numbers<[1], [0], [0], [1], [0, 0, 1, 1], [], []>} : vector<16x64xbf16>, vector<64x128xbf16>, vector<16x128xf32> -> vector<16x128xf32>
    %cst_3 = arith.constant dense<0.000000e+00> : vector<16x128xf32>
    %20 = tpu.matmul %11, %15, %cst_3 {dimension_numbers = #tpu.dot_dimension_numbers<[1], [0], [0], [1], [0, 0, 1, 1], [], []>} : vector<16x64xbf16>, vector<64x128xbf16>, vector<16x128xf32> -> vector<16x128xf32>
    %21 = arith.addf %19, %20 : vector<16x128xf32>
    %cst_4 = arith.constant dense<0.000000e+00> : vector<16x128xf32>
    %22 = tpu.matmul %11, %18, %cst_4 {dimension_numbers = #tpu.dot_dimension_numbers<[1], [0], [0], [1], [0, 0, 1, 1], [], []>} : vector<16x64xbf16>, vector<64x128xbf16>, vector<16x128xf32> -> vector<16x128xf32>
    %23 = arith.addf %21, %22 : vector<16x128xf32>
    %cst_5 = arith.constant 11.3137083 : f32
    %24 = vector.broadcast %cst_5 : f32 to vector<16x128xf32>
    %25 = arith.mulf %23, %24 : vector<16x128xf32>
    %c0_6 = arith.constant 0 : index
    %c0_7 = arith.constant 0 : index
    %26 = vector.load %arg3[%c0_6, %c0_7] : memref<16x128xf32, #tpu.memory_space<vmem>>, vector<16x128xf32>
    tpu.vector_store %arg3[%c0_6, %c0_7], %25 {strides = array<i32>} : memref<16x128xf32, #tpu.memory_space<vmem>>, vector<16x128xf32>,
    return
  }
  func.func @transform_0(%arg0: i32) -> (i32, i32) {
    %c0_i32 = arith.constant 0 : i32
    %c0_i32_0 = arith.constant 0 : i32
    return %arg0, %c0_i32 : i32, i32
  }
  func.func @transform_1(%arg0: i32) -> (i32, i32) {
    %c0_i32 = arith.constant 0 : i32
    %c0_i32_0 = arith.constant 0 : i32
    %c0_i32_1 = arith.constant 0 : i32
    return %c0_i32, %c0_i32_0 : i32, i32
  }
  func.func @transform_2(%arg0: i32) -> (i32, i32) {
    %c0_i32 = arith.constant 0 : i32
    %c0_i32_0 = arith.constant 0 : i32
    return %arg0, %c0_i32 : i32, i32
  }
}

</mosaic_0001>

<llo_original>
// kernel: tpu_custom_call.1
$region0: #{tpu_custom_call.1}
  #allocation0 [shape = 'u32[]', space=smem, size = 0x4, offset = 0x4, fixed_abs, tag = 'smem constant byte address 0x4 - core index']
  #allocation1 [shape = 'u32[72,128]{1,0:T(1,128)}', space=vmem, size = 0x9000, scoped, tag = 'internal scratch']
  %s0 = inlined_call_operand.vmem [shape: s32[16,1], index: 0, kind: input, shape index: {}]
  %s1 = inlined_call_operand.hbm [shape: f32[64,128], index: 1, kind: input, shape index: {}]
  %s2 = inlined_call_operand.hbm [shape: f32[16,128], index: 2, kind: output, shape index: {}]
  %s3 = sld [smem:[#allocation0]]
  $region22: #{tpu_custom_call.1} parent=0
    _
  %s5 = ssub.s32 1, %s3
  %s6 = scalar_select 0, %s5, %s3
  $region1: #{tpu_custom_call.1} parent=0
    #allocation2 [shape = 'u8[32768]{0}', space=vmem, size = 0x8000, scoped, tag = 'input window, operand 1, single buffered']
    #allocation3 [shape = 's32[1]{0}', space=sflag, size = 0x4, scoped, tag = 'scoped memory for tpu_custom_call.1']
    #allocation4 [shape = 's32[1]{0}', space=sflag, size = 0x4, scoped, tag = 'scoped memory for tpu_custom_call.1']
    #allocation5 [shape = 'u8[8192]{0}', space=vmem, size = 0x2000, scoped, tag = 'output window, operand 0, single buffered']
    %7 = vsyncpa [#allocation3], 0
    %8 = vsyncpa [#allocation4], 0
    // Predicated region
    $region2: #{tpu_custom_call.1} parent=1 // pred_check
      _
    $region3: #{tpu_custom_call.1} parent=1 // pred_check_branch
      %10 = sbr.rel (0) target = $region5
    $region4: #{tpu_custom_call.1} parent=1 // pred_region
      _
    $region5: #{tpu_custom_call.1} parent=1 // pred_fallthru
      _
    // Predicated region
    $region6: #{tpu_custom_call.1} parent=1 // pred_check
      _
    $region7: #{tpu_custom_call.1} parent=1 // pred_check_branch
      %12 = sbr.rel (0) target = $region9
    $region8: #{tpu_custom_call.1} parent=1 // pred_region
      %14 = vsyncadd [#allocation3], 0
      %s15 = sshll.u32 %s1, 4
      %s16 = int_to_ptr.hbm [resolvable:$true] %s15
      %s17 = sshll.u32 [#allocation2], 4
      %s18 = int_to_ptr.vmem [resolvable:$true] %s17
      %23 = dma.hbm_to_vmem [thread:$0]  %s16, 1024, %s18, [#allocation3], 128, 128, 8
    $region9: #{tpu_custom_call.1} parent=1 // pred_fallthru
      _
    // Predicated region
    $region10: #{tpu_custom_call.1} parent=1 // pred_check
      _
    $region11: #{tpu_custom_call.1} parent=1 // pred_check_branch
      %25 = sbr.rel (0) target = $region13
    $region12: #{tpu_custom_call.1} parent=1 // pred_region
      %27 = dma.done [#allocation3], 1024
    $region13: #{tpu_custom_call.1} parent=1 // pred_fallthru
      _
    %v29 = vld [vmem:[%s0] sm:$0xff]
    %v30 = vld [vmem:[%s0 + $0x8] sm:$0xff]
    %vm31 = vcmp.gt.s32.totalorder %v29, 0
    %v32 = vsel %vm31, %v29, 0
    %vm33 = vcmp.gt.s32.totalorder %v30, 0
    %v34 = vsel %vm33, %v30, 0
    %vm35 = vcmp.lt.s32.totalorder %v32, 63
    %v36 = vsel %vm35, %v32, 63
    %vm37 = vcmp.lt.s32.totalorder %v34, 63
    %v38 = vsel %vm37, %v34, 63
    %v39 = vlaneseq
    %v40 = vand.u32 %v39, 127
    %41 = vset.pattern.permute.xlu0 0
    %42 = vperm.xlu0 %41, %v36
    %v43 = vpop.permute.xlu0 %42
    %44 = vset.pattern.permute.xlu0 0
    %45 = vperm.xlu0 %44, %v38
    %v46 = vpop.permute.xlu0 %45
    %vm47 = vcmp.eq.s32.totalorder %v43, %v40
    %vm48 = vcmp.eq.s32.totalorder %v46, %v40
    %v49 = vld [vmem:[#allocation2] sm:$0xff]
    %v50 = vld [vmem:[#allocation2 + $0x8] sm:$0xff]
    %v51 = vld [vmem:[#allocation2 + $0x10] sm:$0xff]
    %v52 = vld [vmem:[#allocation2 + $0x18] sm:$0xff]
    %v53 = vld [vmem:[#allocation2 + $0x20] sm:$0xff]
    %v54 = vld [vmem:[#allocation2 + $0x28] sm:$0xff]
    %v55 = vld [vmem:[#allocation2 + $0x30] sm:$0xff]
    %v56 = vld [vmem:[#allocation2 + $0x38] sm:$0xff]
    %v57 = vsel %vm47, 1, 0
    %v58 = vsel %vm48, 1, 0
    %v59 = vcvt.s32.f32 %v57
    %v60 = vcvt.s32.f32 %v58
    %v61 = vpack.c.bf16 %v60, %v59
    %v62 = vpack.c.bf16 %v49, %v49
    %v63 = vpack.c.bf16 %v50, %v50
    %v64 = vpack.c.bf16 %v51, %v51
    %v65 = vpack.c.bf16 %v52, %v52
    %v66 = vpack.c.bf16 %v53, %v53
    %v67 = vpack.c.bf16 %v54, %v54
    %v68 = vpack.c.bf16 %v55, %v55
    %v69 = vpack.c.bf16 %v56, %v56
    %v70 = vunpack.c.l.bf16 %v62
    %v71 = vunpack.c.l.bf16 %v63
    %v72 = vunpack.c.l.bf16 %v64
    %v73 = vunpack.c.l.bf16 %v65
    %v74 = vunpack.c.l.bf16 %v66
    %v75 = vunpack.c.l.bf16 %v67
    %v76 = vunpack.c.l.bf16 %v68
    %v77 = vunpack.c.l.bf16 %v69
    %v78 = vsub.f32 %v49, %v70
    %v79 = vsub.f32 %v50, %v71
    %v80 = vsub.f32 %v51, %v72
    %v81 = vsub.f32 %v52, %v73
    %v82 = vsub.f32 %v53, %v74
    %v83 = vsub.f32 %v54, %v75
    %v84 = vsub.f32 %v55, %v76
    %v85 = vsub.f32 %v56, %v77
    %v86 = vpack.c.bf16 %v78, %v78
    %v87 = vpack.c.bf16 %v79, %v79
    %v88 = vpack.c.bf16 %v80, %v80
    %v89 = vpack.c.bf16 %v81, %v81
    %v90 = vpack.c.bf16 %v82, %v82
    %v91 = vpack.c.bf16 %v83, %v83
    %v92 = vpack.c.bf16 %v84, %v84
    %v93 = vpack.c.bf16 %v85, %v85
    %v94 = vunpack.c.l.bf16 %v86
    %v95 = vunpack.c.l.bf16 %v87
    %v96 = vunpack.c.l.bf16 %v88
    %v97 = vunpack.c.l.bf16 %v89
    %v98 = vunpack.c.l.bf16 %v90
    %v99 = vunpack.c.l.bf16 %v91
    %v100 = vunpack.c.l.bf16 %v92
    %v101 = vunpack.c.l.bf16 %v93
    %v102 = vsub.f32 %v78, %v94
    %v103 = vsub.f32 %v79, %v95
    %v104 = vsub.f32 %v80, %v96
    %v105 = vsub.f32 %v81, %v97
    %v106 = vsub.f32 %v82, %v98
    %v107 = vsub.f32 %v83, %v99
    %v108 = vsub.f32 %v84, %v100
    %v109 = vsub.f32 %v85, %v101
    %v110 = vpack.c.bf16 %v103, %v102
    %v111 = vpack.c.bf16 %v105, %v104
    %v112 = vpack.c.bf16 %v107, %v106
    %v113 = vpack.c.bf16 %v109, %v108
    %v122 = vunpack.c.l.b16 %v86
    %v123 = vunpack.c.l.b16 %v87
    %v124 = vunpack.c.l.b16 %v88
    %v125 = vunpack.c.l.b16 %v89
    %v126 = vunpack.c.l.b16 %v90
    %v127 = vunpack.c.l.b16 %v91
    %v128 = vunpack.c.l.b16 %v92
    %v129 = vunpack.c.l.b16 %v93
    %v130 = vpack.c.b16 %v123, %v122
    %v131 = vpack.c.b16 %v125, %v124
    %v132 = vpack.c.b16 %v127, %v126
    %v133 = vpack.c.b16 %v129, %v128
    %vm138 = vcmask 523264
    %v140 = vsel %vm138, %v61, 0
    %142 = vmatpush.bf16.msra.mxu0 0
    %143 = vmatpush.bf16.msra.mxu0 0
    %144 = vmatpush.bf16.msra.mxu0 0
    %145 = vmatpush.bf16.msra.mxu0 0
    %146 = vmatpush.bf16.msra.mxu0 %v133
    %147 = vmatpush.bf16.msra.mxu0 %v132
    %148 = vmatpush.bf16.msra.mxu0 %v131
    %149 = vmatpush.bf16.msra.mxu0 %v130
    %150 = vmatmul.bf16.gmra.mxu0 %v140
    %v151 = vpop.f32.mrf.mxu0
    %v152 = vadd.f32 0.0, %v151
    %v153 = vpop.f32.mrf.mxu0
    %v154 = vadd.f32 0.0, %v153
    %155 = vdwg.mxu0
    %v164 = vunpack.c.l.b16 %v62
    %v165 = vunpack.c.l.b16 %v63
    %v166 = vunpack.c.l.b16 %v64
    %v167 = vunpack.c.l.b16 %v65
    %v168 = vunpack.c.l.b16 %v66
    %v169 = vunpack.c.l.b16 %v67
    %v170 = vunpack.c.l.b16 %v68
    %v171 = vunpack.c.l.b16 %v69
    %v172 = vpack.c.b16 %v165, %v164
    %v173 = vpack.c.b16 %v167, %v166
    %v174 = vpack.c.b16 %v169, %v168
    %v175 = vpack.c.b16 %v171, %v170
    %180 = vmatpush.bf16.msra.mxu0 0
    %181 = vmatpush.bf16.msra.mxu0 0
    %182 = vmatpush.bf16.msra.mxu0 0
    %183 = vmatpush.bf16.msra.mxu0 0
    %184 = vmatpush.bf16.msra.mxu0 %v175
    %185 = vmatpush.bf16.msra.mxu0 %v174
    %186 = vmatpush.bf16.msra.mxu0 %v173
    %187 = vmatpush.bf16.msra.mxu0 %v172
    %188 = vmatmul.bf16.gmra.mxu0 %v140
    %v189 = vpop.f32.mrf.mxu0
    %v190 = vadd.f32 %v152, %v189
    %v191 = vpop.f32.mrf.mxu0
    %v192 = vadd.f32 %v154, %v191
    %193 = vdwg.mxu0
    %194 = vmatpush.bf16.msra.mxu0 0
    %195 = vmatpush.bf16.msra.mxu0 0
    %196 = vmatpush.bf16.msra.mxu0 0
    %197 = vmatpush.bf16.msra.mxu0 0
    %198 = vmatpush.bf16.msra.mxu0 %v113
    %199 = vmatpush.bf16.msra.mxu0 %v112
    %200 = vmatpush.bf16.msra.mxu0 %v111
    %201 = vmatpush.bf16.msra.mxu0 %v110
    %202 = vmatmul.bf16.gmra.mxu0 %v140
    %v203 = vpop.f32.mrf.mxu0
    %v204 = vadd.f32 0.0, %v203
    %v205 = vpop.f32.mrf.mxu0
    %v206 = vadd.f32 0.0, %v205
    %207 = vdwg.mxu0
    %v208 = vadd.f32 %v190, %v204
    %v209 = vadd.f32 %v192, %v206
    %v210 = vmul.f32 %v208, 11.313708
    %v211 = vmul.f32 %v209, 11.313708
    %212 = vst [vmem:[#allocation5] sm:$0xff] %v210
    %213 = vst [vmem:[#allocation5 + $0x8] sm:$0xff] %v211
    // Predicated region
    $region14: #{tpu_custom_call.1} parent=1 // pred_check
      _
    $region15: #{tpu_custom_call.1} parent=1 // pred_check_branch
      %215 = sbr.rel (0) target = $region17
    $region16: #{tpu_custom_call.1} parent=1 // pred_region
      %217 = vsyncadd [#allocation4], 0
      %s218 = sshll.u32 [#allocation5], 4
      %s219 = int_to_ptr.vmem [resolvable:$true] %s218
      %s220 = sshll.u32 %s2, 4
      %s221 = int_to_ptr.hbm [resolvable:$true] %s220
      %226 = dma.vmem_to_hbm [thread:$0]  %s219, 256, %s221, [#allocation4], 128, 128, 8
    $region17: #{tpu_custom_call.1} parent=1 // pred_fallthru
      _
    // Predicated region
    $region18: #{tpu_custom_call.1} parent=1 // pred_check
      _
    $region19: #{tpu_custom_call.1} parent=1 // pred_check_branch
      %228 = sbr.rel (0) target = $region21
    $region20: #{tpu_custom_call.1} parent=1 // pred_region
      %230 = dma.done [#allocation4], 256
    $region21: #{tpu_custom_call.1} parent=1 // pred_fallthru
      _
    %231 = vsyncpa [#allocation3], 1
    %232 = vsyncpa [#allocation4], 1

</llo_original>
